<compile_context>
chip_gen: v7x
topology: tpu7x:2x2x1
jax: 0.10.0
libtpu: 0.0.40
codegen_flags: <defaults>
</compile_context>

<pallas_src>
import math

import jax
import jax.numpy as jnp
from jax.experimental import pallas as pl
from jax.experimental.pallas import tpu as pltpu

EPS = 1e-6
_LANE = 128
_TARGET_BLOCK_BYTES = 2 * 1024 * 1024   # ~2 MiB input block (1-4 MiB sweet spot)


def _layernorm_kernel(x_ref, w_ref, o_ref):
    # x_ref: (row_tile, C) rows, w_ref: (1, C) scale, o_ref: (row_tile, C)
    x = x_ref[...].astype(jnp.float32)
    inv_c = jnp.float32(1.0 / x.shape[-1])

    # Two-pass moments in f32: numerically robust vs E[x^2]-mean^2, and the
    # centered xc is reused for the output so the extra cost is ~nil.
    mean = jnp.sum(x, axis=-1, keepdims=True) * inv_c          # lane reduce -> XLU
    xc = x - mean
    var = jnp.sum(xc * xc, axis=-1, keepdims=True) * inv_c     # lane reduce -> XLU
    inv = jax.lax.rsqrt(var + EPS)                             # EUP slot

    w = w_ref[...].astype(jnp.float32)
    # TODO(synk): module supports an optional bias; default bias=False so it is omitted.
    o_ref[...] = (xc * inv * w).astype(o_ref.dtype)


def _round_down(x, m):
    return (x // m) * m


def _reference(x, weight):
    xf = x.astype(jnp.float32)
    mean = jnp.mean(xf, axis=-1, keepdims=True)
    var = jnp.mean((xf - mean) ** 2, axis=-1, keepdims=True)
    return ((xf - mean) * jax.lax.rsqrt(var + EPS) * weight.astype(jnp.float32)).astype(x.dtype)


def layer_norm(x, weight, *, row_tile=None):
    """LayerNorm over the last dim of x, scaled by `weight` (shape [C])."""
    orig_shape = x.shape
    C = orig_shape[-1]
    rows = math.prod(orig_shape[:-1]) if len(orig_shape) > 1 else 1

    # Lane-sparse or small ragged feature dims: masked partial stores dominate;
    # plain XLA is the better tool there.
    if rows == 0 or C < _LANE or (C % _LANE != 0 and C < 4 * _LANE):
        return _reference(x, weight)

    x2 = x.reshape(rows, C)
    w2 = weight.reshape(1, C)

    itemsize = jnp.dtype(x.dtype).itemsize
    # Full sublane packing: 8 rows for 32-bit, 16 for 16-bit, 32 for 8-bit.
    sublane = 8 * max(1, 4 // max(1, itemsize))
    rows_padded = pl.cdiv(rows, sublane) * sublane

    if row_tile is None:
        # Bytes-based cap: ~2 MiB of input per block.
        row_tile = _TARGET_BLOCK_BYTES // max(1, C * itemsize)
        row_tile = min(row_tile, rows_padded)
        row_tile = max(sublane, _round_down(row_tile, sublane))
    else:
        row_tile = min(int(row_tile), rows_padded)
        row_tile = max(sublane, _round_down(row_tile, sublane))

    grid_rows = pl.cdiv(rows, row_tile)   # partial last block: OOB writes dropped (rows independent)

    # Physical VMEM cap (per-TC).  v7x has 64 MiB/TC; clamp in case the query
    # reports a chip-level number.  Only used as an upper bound on the limit.
    try:
        vmem_cap = int(pltpu.get_tpu_info().vmem_capacity_bytes)
    except Exception:
        vmem_cap = 64 * 1024 * 1024
    vmem_cap = min(vmem_cap, 64 * 1024 * 1024) if vmem_cap <= 0 else vmem_cap

    # Footprint: double-buffered in + out blocks, ~2 full-tile f32 temporaries
    # inside the kernel, and the (sublane-padded) weight row; plus headroom for
    # Mosaic internal scratch.
    block_elems = row_tile * C
    footprint = (
        2 * block_elems * itemsize        # input, double-buffered
        + 2 * block_elems * itemsize      # output, double-buffered
        + 2 * block_elems * 4             # f32 temporaries (x upcast, xc)
        + 2 * 8 * C * 4                   # padded weight row, double-buffered
    )
    vmem_limit = int(min(vmem_cap, footprint + (8 << 20)))

    out = pl.pallas_call(
        _layernorm_kernel,
        out_shape=jax.ShapeDtypeStruct((rows, C), x.dtype),
        grid_spec=pltpu.PrefetchScalarGridSpec(
            num_scalar_prefetch=0,
            grid=(grid_rows,),
            in_specs=[
                pl.BlockSpec((row_tile, C), lambda i: (i, 0)),
                pl.BlockSpec((1, C), lambda i: (0, 0)),   # constant index -> not re-DMA'd
            ],
            out_specs=pl.BlockSpec((row_tile, C), lambda i: (i, 0)),
        ),
        compiler_params=pltpu.CompilerParams(
            dimension_semantics=("parallel",),   # shards rows across v7x's 2 TCs
            vmem_limit_bytes=vmem_limit,
        ),
    )(x2, w2)

    return out.reshape(orig_shape)


if __name__ == "__main__":
    key = jax.random.PRNGKey(0)

    # Lane-dense small shape exercising the Pallas path (B=2, T=8, C=128).
    B, T, C = 2, 8, 128
    x = jax.random.normal(key, (B, T, C), dtype=jnp.float32)
    weight = jnp.ones((C,), dtype=jnp.float32)   # nn.Parameter(torch.ones(ndim)), bias=False

    y = jax.block_until_ready(layer_norm(x, weight))
    ref = _reference(x, weight)
    assert jnp.allclose(y, ref, atol=1e-4, rtol=1e-5), float(jnp.max(jnp.abs(y - ref)))

    # Numerical robustness: large per-row offsets (two-pass variance path).
    x_off = x + 100.0
    y_off = jax.block_until_ready(layer_norm(x_off, weight))
    ref_off = _reference(x_off, weight)
    assert jnp.allclose(y_off, ref_off, atol=1e-3, rtol=1e-4), float(jnp.max(jnp.abs(y_off - ref_off)))

    # Partial-last-block path (rows not divisible by row_tile).
    x_rag = jax.random.normal(jax.random.PRNGKey(2), (3, 5, C), dtype=jnp.float32)
    y_rag = jax.block_until_ready(layer_norm(x_rag, weight, row_tile=8))
    ref_rag = _reference(x_rag, weight)
    assert jnp.allclose(y_rag, ref_rag, atol=1e-4, rtol=1e-5)

    # Small-C (lane-sparse) XLA fallback path.
    x_small = jax.random.normal(jax.random.PRNGKey(1), (2, 8, 32), dtype=jnp.float32)
    w_small = jnp.ones((32,), dtype=jnp.float32)
    y_small = jax.block_until_ready(layer_norm(x_small, w_small))
    ref_small = _reference(x_small, w_small)
    assert jnp.allclose(y_small, ref_small, atol=1e-4, rtol=1e-5)

    print("KERNEL_OK")
</pallas_src>

<mosaic_0001>
module attributes {stable_mosaic.version = 11 : i64} {
  func.func @_layernorm_kernel(%arg0: i32, %arg1: memref<16x128xf32, #tpu.memory_space<vmem>>, %arg2: memref<1x128xf32, #tpu.memory_space<vmem>>, %arg3: memref<16x128xf32, #tpu.memory_space<vmem>>) attributes {dimension_semantics = [#tpu.dimension_semantics<parallel>], iteration_bounds = array<i64: 1>, scalar_prefetch = 0 : i64, scratch_operands = 0 : i64, tpu.core_type = #tpu.core_type<tc>, window_params = [{transform_indices = @transform_0, window_bounds = array<i64: 16, 128>}, {pipeline_mode = #tpu.pipeline_mode<synchronous>, transform_indices = @transform_1, window_bounds = array<i64: 1, 128>}, {transform_indices = @transform_2, window_bounds = array<i64: 16, 128>}]} {
    %c0 = arith.constant 0 : index
    %c0_0 = arith.constant 0 : index
    %0 = vector.load %arg1[%c0, %c0_0] : memref<16x128xf32, #tpu.memory_space<vmem>>, vector<16x128xf32>
    %cst = arith.constant dense<0.000000e+00> : vector<16xf32>
    %1 = vector.multi_reduction <add>, %0, %cst [1] : vector<16x128xf32> to vector<16xf32>
    %2 = vector.shape_cast %1 : vector<16xf32> to vector<16x1xf32>
    %cst_1 = arith.constant 7.812500e-03 : f32
    %3 = vector.broadcast %cst_1 : f32 to vector<16x1xf32>
    %4 = arith.mulf %2, %3 : vector<16x1xf32>
    %5 = vector.broadcast %4 : vector<16x1xf32> to vector<16x128xf32>
    %6 = arith.subf %0, %5 : vector<16x128xf32>
    %7 = arith.mulf %6, %6 : vector<16x128xf32>
    %cst_2 = arith.constant dense<0.000000e+00> : vector<16xf32>
    %8 = vector.multi_reduction <add>, %7, %cst_2 [1] : vector<16x128xf32> to vector<16xf32>
    %9 = vector.shape_cast %8 : vector<16xf32> to vector<16x1xf32>
    %cst_3 = arith.constant 7.812500e-03 : f32
    %10 = vector.broadcast %cst_3 : f32 to vector<16x1xf32>
    %11 = arith.mulf %9, %10 : vector<16x1xf32>
    %cst_4 = arith.constant 9.99999997E-7 : f32
    %12 = vector.broadcast %cst_4 : f32 to vector<16x1xf32>
    %13 = arith.addf %11, %12 : vector<16x1xf32>
    %14 = math.rsqrt %13 : vector<16x1xf32>
    %c0_5 = arith.constant 0 : index
    %c0_6 = arith.constant 0 : index
    %15 = vector.load %arg2[%c0_5, %c0_6] : memref<1x128xf32, #tpu.memory_space<vmem>>, vector<1x128xf32>
    %16 = vector.broadcast %14 : vector<16x1xf32> to vector<16x128xf32>
    %17 = arith.mulf %6, %16 : vector<16x128xf32>
    %18 = vector.broadcast %15 : vector<1x128xf32> to vector<16x128xf32>
    %19 = arith.mulf %17, %18 : vector<16x128xf32>
    %c0_7 = arith.constant 0 : index
    %c0_8 = arith.constant 0 : index
    %20 = vector.load %arg3[%c0_7, %c0_8] : memref<16x128xf32, #tpu.memory_space<vmem>>, vector<16x128xf32>
    tpu.vector_store %arg3[%c0_7, %c0_8], %19 {strides = array<i32>} : memref<16x128xf32, #tpu.memory_space<vmem>>, vector<16x128xf32>,
    return
  }
  func.func @transform_0(%arg0: i32) -> (i32, i32) {
    %c0_i32 = arith.constant 0 : i32
    %c0_i32_0 = arith.constant 0 : i32
    return %arg0, %c0_i32 : i32, i32
  }
  func.func @transform_1(%arg0: i32) -> (i32, i32) {
    %c0_i32 = arith.constant 0 : i32
    %c0_i32_0 = arith.constant 0 : i32
    %c0_i32_1 = arith.constant 0 : i32
    return %c0_i32, %c0_i32_0 : i32, i32
  }
  func.func @transform_2(%arg0: i32) -> (i32, i32) {
    %c0_i32 = arith.constant 0 : i32
    %c0_i32_0 = arith.constant 0 : i32
    return %arg0, %c0_i32 : i32, i32
  }
}

</mosaic_0001>

<llo_original>
// kernel: tpu_custom_call.1
$region0: #{tpu_custom_call.1}
  #allocation0 [shape = 'u32[]', space=smem, size = 0x4, offset = 0x4, fixed_abs, tag = 'smem constant byte address 0x4 - core index']
  #allocation1 [shape = 'u32[144,128]{1,0:T(1,128)}', space=vmem, size = 0x12000, scoped, tag = 'internal scratch']
  %s0 = inlined_call_operand.hbm [shape: f32[16,128], index: 0, kind: input, shape index: {}]
  %s1 = inlined_call_operand.vmem [shape: f32[1,128], index: 1, kind: input, shape index: {}]
  %s2 = inlined_call_operand.hbm [shape: f32[16,128], index: 2, kind: output, shape index: {}]
  %s3 = sld [smem:[#allocation0]]
  $region22: #{tpu_custom_call.1} parent=0
    _
  %s5 = ssub.s32 1, %s3
  %s6 = scalar_select 0, %s5, %s3
  $region1: #{tpu_custom_call.1} parent=0
    #allocation2 [shape = 'u8[8192]{0}', space=vmem, size = 0x2000, scoped, tag = 'input window, operand 0, single buffered']
    #allocation3 [shape = 's32[1]{0}', space=sflag, size = 0x4, scoped, tag = 'scoped memory for tpu_custom_call.1']
    #allocation4 [shape = 's32[1]{0}', space=sflag, size = 0x4, scoped, tag = 'scoped memory for tpu_custom_call.1']
    #allocation5 [shape = 'u8[8192]{0}', space=vmem, size = 0x2000, scoped, tag = 'output window, operand 0, single buffered']
    %7 = vsyncpa [#allocation3], 0
    %8 = vsyncpa [#allocation4], 0
    // Predicated region
    $region2: #{tpu_custom_call.1} parent=1 // pred_check
      _
    $region3: #{tpu_custom_call.1} parent=1 // pred_check_branch
      %10 = sbr.rel (0) target = $region5
    $region4: #{tpu_custom_call.1} parent=1 // pred_region
      %s12 = ssub.s32 256, 256
      %13 = vsyncadd [#allocation3], %s12
      %s14 = sshll.u32 [#allocation2], 4
      %s15 = int_to_ptr.vmem [resolvable:$true] %s14
      %20 = dma.hbm_to_vmem [thread:$0]  %s0, 256, %s15, [#allocation3], 128, 128, 8
    $region5: #{tpu_custom_call.1} parent=1 // pred_fallthru
      _
    // Predicated region
    $region6: #{tpu_custom_call.1} parent=1 // pred_check
      _
    $region7: #{tpu_custom_call.1} parent=1 // pred_check_branch
      %22 = sbr.rel (0) target = $region9
    $region8: #{tpu_custom_call.1} parent=1 // pred_region
      _
    $region9: #{tpu_custom_call.1} parent=1 // pred_fallthru
      _
    // Predicated region
    $region10: #{tpu_custom_call.1} parent=1 // pred_check
      _
    $region11: #{tpu_custom_call.1} parent=1 // pred_check_branch
      %24 = sbr.rel (0) target = $region13
    $region12: #{tpu_custom_call.1} parent=1 // pred_region
      %25 = dma.done [#allocation3], 256
    $region13: #{tpu_custom_call.1} parent=1 // pred_fallthru
      _
    %v26 = vld [vmem:[#allocation2] sm:$0xff]
    %v27 = vld [vmem:[#allocation2 + $0x8] sm:$0xff]
    %28 = vadd.xlane.f32.xlu0 %v26
    %v29 = vpop.xlane.xlu0 %28
    %30 = vadd.xlane.f32.xlu0 %v27
    %v31 = vpop.xlane.xlu0 %30
    %v32 = vmul.f32 %v29, 0.0078125
    %v33 = vmul.f32 %v31, 0.0078125
    %v34 = vsub.f32 %v26, %v32
    %v35 = vsub.f32 %v27, %v33
    %v36 = vmul.f32 %v34, %v34
    %v37 = vmul.f32 %v35, %v35
    %38 = vadd.xlane.f32.xlu0 %v36
    %v39 = vpop.xlane.xlu0 %38
    %40 = vadd.xlane.f32.xlu0 %v37
    %v41 = vpop.xlane.xlu0 %40
    %v42 = vmul.f32 %v39, 0.0078125
    %v43 = vmul.f32 %v41, 0.0078125
    %v44 = vadd.f32 %v42, 1e-06
    %v45 = vadd.f32 %v43, 1e-06
    %v46 = vrsqrt.pop %v44
    %v47 = vrsqrt.pop %v45
    %v48 = vld [vmem:[%s1] sm:$0x1]
    %v49 = vmul.f32 %v34, %v46
    %v50 = vmul.f32 %v35, %v47
    %v52 = vlaneseq
    %v53 = vshrl.u32 %v52, 7
    %v54 = vsub.s32 0, %v53
    %v55 = vrot.slane %v48, %v54
    %v57 = vmul.f32 %v49, %v55
    %v58 = vmul.f32 %v50, %v55
    %59 = vst [vmem:[#allocation5] sm:$0xff] %v57
    %60 = vst [vmem:[#allocation5 + $0x8] sm:$0xff] %v58
    // Predicated region
    $region14: #{tpu_custom_call.1} parent=1 // pred_check
      _
    $region15: #{tpu_custom_call.1} parent=1 // pred_check_branch
      %62 = sbr.rel (0) target = $region17
    $region16: #{tpu_custom_call.1} parent=1 // pred_region
      %s64 = ssub.s32 256, 256
      %65 = vsyncadd [#allocation4], %s64
      %s66 = sshll.u32 [#allocation5], 4
      %s67 = int_to_ptr.vmem [resolvable:$true] %s66
      %72 = dma.vmem_to_hbm [thread:$0]  %s67, 256, %s2, [#allocation4], 128, 128, 8
    $region17: #{tpu_custom_call.1} parent=1 // pred_fallthru
      _
    // Predicated region
    $region18: #{tpu_custom_call.1} parent=1 // pred_check
      _
    $region19: #{tpu_custom_call.1} parent=1 // pred_check_branch
      %74 = sbr.rel (0) target = $region21
    $region20: #{tpu_custom_call.1} parent=1 // pred_region
      %75 = dma.done [#allocation4], 256
    $region21: #{tpu_custom_call.1} parent=1 // pred_fallthru
      _
    %76 = vsyncpa [#allocation3], 1
    %77 = vsyncpa [#allocation4], 1

</llo_original>
